<compile_context>
chip_gen: v7x
topology: tpu7x:2x2x1
jax: 0.10.0
libtpu: 0.0.40
codegen_flags: <defaults>
</compile_context>

<pallas_src>
import jax
import jax.numpy as jnp
from jax import lax
from jax.experimental import pallas as pl
from jax.experimental.pallas import tpu as pltpu


def _round_up(x, m):
    return ((x + m - 1) // m) * m


def _embed_kernel(ids_ref, tok_hbm, pos_ref, out_ref, gbuf, sem):
    # ids_ref : SMEM int32 [B * s_pad]   (scalar prefetch; flat index b*s_pad + s)
    # tok_hbm : HBM  [V, D]              (memory_space=pl.ANY, rows gathered by DMA)
    # pos_ref : VMEM [ts, D]             (auto-pipelined; block index depends only on
    #                                     st, so revisits across b skip the re-DMA)
    # out_ref : VMEM [1, ts, D]
    # gbuf    : VMEM [2, ts, D]          (double-buffered gathered embedding rows)
    # sem     : DMA semaphores [2]       (one per gather slot)
    st = pl.program_id(0)
    b = pl.program_id(1)
    n_b = pl.num_programs(1)
    ts = gbuf.shape[1]
    s_pad = pl.num_programs(0) * ts

    def issue_rows(b_idx, slot):
        # Launch ts independent row DMAs into `slot`; they overlap each other
        # and (for the "next tile" case) the current tile's wait/add/writeback.
        base = b_idx * s_pad + st * ts

        def body(i, carry):
            row = ids_ref[base + i]
            pltpu.make_async_copy(
                tok_hbm.at[pl.ds(row, 1), :],
                gbuf.at[slot, pl.ds(i, 1), :],
                sem.at[slot],
            ).start()
            return carry

        # Partial unroll: lets the scheduler overlap back-to-back descriptor
        # pushes through the 1-wide vector-misc slot.
        lax.fori_loop(0, ts, body, 0, unroll=8)

    # Pipeline prologue: the first tile of this st-row is fetched here.
    @pl.when(b == 0)
    def _():
        issue_rows(0, 0)

    # Prefetch the next batch's tile (same st) into the other slot *before*
    # blocking on the current one, so its gather overlaps this step's compute.
    @pl.when(b + 1 < n_b)
    def _():
        issue_rows(b + 1, (b + 1) & 1)

    # Wait for the current slot.  A DMA wait only consumes the byte count, so a
    # single aggregate-size descriptor (same shape as the slot buffer) replaces
    # ts per-row waits; the src ref is used solely for its size — no SMEM reads
    # or id-dependent descriptors in this tail.
    slot = b & 1
    pltpu.make_async_copy(gbuf.at[slot], gbuf.at[slot], sem.at[slot]).wait()

    # Dense (ts, D) VPU add in the table dtype (bf16 stays bf16 on v6e/v7x).
    out_ref[0] = (gbuf[slot] + pos_ref[...]).astype(out_ref.dtype)


def transformer_embedding(x_ids, tok_table, pos_table, *, tile_s=512):
    """x_ids: int [B, S]; tok_table: [V, D]; pos_table: [>=S, D] -> [B, S, D]."""
    B, S = x_ids.shape
    V, D = tok_table.shape
    bytes_per = jnp.dtype(tok_table.dtype).itemsize

    # Tokens per grid step: sublane-dense multiple of 8, capped so each (ts, D)
    # buffer stays <= ~2 MiB.  Six such buffers are live per step (2x pos,
    # 2x out, 2x gather scratch) => <= ~12 MiB, under v5e's 16 MiB default
    # scoped VMEM and well within v6e/v7x budgets.
    vmem_budget_per_buf = 2 * 1024 * 1024
    ts_cap = max(8, (vmem_budget_per_buf // (D * bytes_per)) // 8 * 8)
    ts = min(tile_s, ts_cap, _round_up(S, 8))
    s_pad = _round_up(S, ts)
    n_st = s_pad // ts

    ids = x_ids.astype(jnp.int32)
    if s_pad != S:
        ids = jnp.pad(ids, ((0, 0), (0, s_pad - S)))
    # Flat 1-D ids: avoids 2-D SMEM row padding (rows pad to multiples of 8).
    ids_flat = ids.reshape(-1)

    pos = pos_table[:S].astype(tok_table.dtype)
    if s_pad != S:
        pos = jnp.pad(pos, ((0, s_pad - S), (0, 0)))

    grid_spec = pltpu.PrefetchScalarGridSpec(
        num_scalar_prefetch=1,
        # st outer, b inner: the pos block index is constant across the inner b
        # axis, so its HBM fetch happens once per st instead of once per (st, b).
        grid=(n_st, B),
        in_specs=[
            # Token table stays in HBM; rows gathered manually in-kernel.
            pl.BlockSpec(memory_space=pl.ANY),
            # Positional encoding: one contiguous (ts, D) block per seq-tile.
            pl.BlockSpec((ts, D), lambda st, b, ids: (st, 0)),
        ],
        out_specs=pl.BlockSpec((1, ts, D), lambda st, b, ids: (b, st, 0)),
        scratch_shapes=[
            pltpu.VMEM((2, ts, D), tok_table.dtype),  # double-buffered gather
            pltpu.SemaphoreType.DMA((2,)),            # one sem per gather slot
        ],
    )

    out = pl.pallas_call(
        _embed_kernel,
        out_shape=jax.ShapeDtypeStruct((B, s_pad, D), tok_table.dtype),
        grid_spec=grid_spec,
        compiler_params=pltpu.CompilerParams(
            # st is independent work (v7x core split); b carries the
            # double-buffer state and must iterate sequentially per core.
            dimension_semantics=("parallel", "arbitrary")
        ),
    )(ids_flat, tok_table, pos)

    if s_pad != S:
        out = out[:, :S, :]
    return out


def make_position_encoding(max_len, d_model, dtype=jnp.float32):
    """Matches PositionEmbedding.__init__ exactly (assumes even d_model)."""
    pos = jnp.arange(0, max_len, dtype=jnp.float32)[:, None]
    _2i = jnp.arange(0, d_model, 2, dtype=jnp.float32)
    angle = pos / jnp.power(10000.0, _2i / d_model)
    enc = jnp.zeros((max_len, d_model), dtype=jnp.float32)
    enc = enc.at[:, 0::2].set(jnp.sin(angle))
    enc = enc.at[:, 1::2].set(jnp.cos(angle))
    return enc.astype(dtype)


def make_token_embedding(vocab_size, d_model, key, dtype=jnp.float32):
    """nn.Embedding(vocab_size, d_model, padding_idx=1): N(0,1) init, row 1 zeroed."""
    w = jax.random.normal(key, (vocab_size, d_model), dtype=jnp.float32)
    w = w.at[1, :].set(0.0)
    return w.astype(dtype)


if __name__ == "__main__":
    # Small deterministic example consistent with the module's forward.
    B, S = 2, 8
    vocab_size, d_model, max_len = 64, 128, 10000
    drop_prob = 0.1  # identity in eval mode

    key = jax.random.PRNGKey(0)
    k_ids, k_emb = jax.random.split(key)

    x_ids = jax.random.randint(k_ids, (B, S), 0, vocab_size, dtype=jnp.int32)
    tok_table = make_token_embedding(vocab_size, d_model, k_emb)
    pos_full = make_position_encoding(max_len, d_model)
    pos_table = pos_full[:S, :]  # PositionEmbedding.forward slices to seq_len

    out = transformer_embedding(x_ids, tok_table, pos_table)
    out = jax.block_until_ready(out)

    # Pure-JAX reference for sanity.
    ref = jnp.take(tok_table, x_ids, axis=0) + pos_table[None, :, :]
    assert out.shape == (B, S, d_model)
    assert jnp.allclose(out, ref, atol=1e-6), "mismatch vs reference"

    print("KERNEL_OK")
</pallas_src>

<mosaic_0001>
module attributes {stable_mosaic.version = 11 : i64} {
  func.func @_embed_kernel(%arg0: i32, %arg1: i32, %arg2: memref<16xi32, #tpu.memory_space<smem>>, %arg3: memref<64x128xf32, #tpu.memory_space<any>>, %arg4: memref<8x128xf32, #tpu.memory_space<vmem>>, %arg5: memref<1x8x128xf32, #tpu.memory_space<vmem>>, %arg6: memref<2x8x128xf32, #tpu.memory_space<vmem>>, %arg7: memref<2x!tpu.dma_semaphore, #tpu.memory_space<semaphore_mem>>) attributes {dimension_semantics = [#tpu.dimension_semantics<parallel>, #tpu.dimension_semantics<arbitrary>], iteration_bounds = array<i64: 1, 2>, scalar_prefetch = 1 : i64, scratch_operands = 2 : i64, tpu.core_type = #tpu.core_type<tc>, window_params = [{}, {transform_indices = @transform_1, window_bounds = array<i64: 8, 128>}, {transform_indices = @transform_2, window_bounds = array<i64: 1, 8, 128>}]} {
    %c0_i32 = arith.constant 0 : i32
    %0 = arith.cmpi eq, %arg1, %c0_i32 : i32
    %1 = arith.extui %0 : i1 to i32
    %c0_i32_0 = arith.constant 0 : i32
    %2 = arith.cmpi ne, %1, %c0_i32_0 : i32
    scf.if %2 {
      %c8_i32 = arith.constant 8 : i32
      %22 = arith.muli %arg0, %c8_i32 : i32
      %c0_i32_13 = arith.constant 0 : i32
      %23 = arith.addi %c0_i32_13, %22 : i32
      %c0_i32_14 = arith.constant 0 : i32
      %24 = arith.addi %23, %c0_i32_14 : i32
      %25 = arith.index_cast %24 : i32 to index
      %26 = memref.load %arg2[%25] : memref<16xi32, #tpu.memory_space<smem>>
      %c0_i32_15 = arith.constant 0 : i32
      %c0_i32_16 = arith.constant 0 : i32
      %c0_i32_17 = arith.constant 0 : i32
      %27 = tpu.memref_slice %arg3[%26, %c0_i32_17] : memref<64x128xf32, #tpu.memory_space<any>> -> memref<1x128xf32, #tpu.memory_space<any>>
      %c0_i32_18 = arith.constant 0 : i32
      %28 = tpu.memref_slice %arg6[%c0_i32_15, %c0_i32_14, %c0_i32_18] : memref<2x8x128xf32, #tpu.memory_space<vmem>> -> memref<1x1x128xf32, #tpu.memory_space<vmem>>
      %29 = tpu.memref_squeeze %28 : memref<1x1x128xf32, #tpu.memory_space<vmem>> -> memref<1x128xf32, #tpu.memory_space<vmem>>
      %30 = tpu.memref_slice %arg7[%c0_i32_16] : memref<2x!tpu.dma_semaphore, #tpu.memory_space<semaphore_mem>> -> memref<1x!tpu.dma_semaphore, #tpu.memory_space<semaphore_mem>>
      %31 = tpu.memref_squeeze %30 : memref<1x!tpu.dma_semaphore, #tpu.memory_space<semaphore_mem>> -> memref<!tpu.dma_semaphore, #tpu.memory_space<semaphore_mem>>
      tpu.enqueue_dma source(%27 : memref<1x128xf32, #tpu.memory_space<any>>) target(%29 : memref<1x128xf32, #tpu.memory_space<vmem>>) target_semaphore(%31 : memref<!tpu.dma_semaphore, #tpu.memory_space<semaphore_mem>>)
      %c1_i32_19 = arith.constant 1 : i32
      %32 = arith.addi %23, %c1_i32_19 : i32
      %33 = arith.index_cast %32 : i32 to index
      %34 = memref.load %arg2[%33] : memref<16xi32, #tpu.memory_space<smem>>
      %c0_i32_20 = arith.constant 0 : i32
      %c0_i32_21 = arith.constant 0 : i32
      %c0_i32_22 = arith.constant 0 : i32
      %35 = tpu.memref_slice %arg3[%34, %c0_i32_22] : memref<64x128xf32, #tpu.memory_space<any>> -> memref<1x128xf32, #tpu.memory_space<any>>
      %c0_i32_23 = arith.constant 0 : i32
      %36 = tpu.memref_slice %arg6[%c0_i32_20, %c1_i32_19, %c0_i32_23] : memref<2x8x128xf32, #tpu.memory_space<vmem>> -> memref<1x1x128xf32, #tpu.memory_space<vmem>>
      %37 = tpu.memref_squeeze %36 : memref<1x1x128xf32, #tpu.memory_space<vmem>> -> memref<1x128xf32, #tpu.memory_space<vmem>>
      %38 = tpu.memref_slice %arg7[%c0_i32_21] : memref<2x!tpu.dma_semaphore, #tpu.memory_space<semaphore_mem>> -> memref<1x!tpu.dma_semaphore, #tpu.memory_space<semaphore_mem>>
      %39 = tpu.memref_squeeze %38 : memref<1x!tpu.dma_semaphore, #tpu.memory_space<semaphore_mem>> -> memref<!tpu.dma_semaphore, #tpu.memory_space<semaphore_mem>>
      tpu.enqueue_dma source(%35 : memref<1x128xf32, #tpu.memory_space<any>>) target(%37 : memref<1x128xf32, #tpu.memory_space<vmem>>) target_semaphore(%39 : memref<!tpu.dma_semaphore, #tpu.memory_space<semaphore_mem>>)
      %c2_i32_24 = arith.constant 2 : i32
      %40 = arith.addi %23, %c2_i32_24 : i32
      %41 = arith.index_cast %40 : i32 to index
      %42 = memref.load %arg2[%41] : memref<16xi32, #tpu.memory_space<smem>>
      %c0_i32_25 = arith.constant 0 : i32
      %c0_i32_26 = arith.constant 0 : i32
      %c0_i32_27 = arith.constant 0 : i32
      %43 = tpu.memref_slice %arg3[%42, %c0_i32_27] : memref<64x128xf32, #tpu.memory_space<any>> -> memref<1x128xf32, #tpu.memory_space<any>>
      %c0_i32_28 = arith.constant 0 : i32
      %44 = tpu.memref_slice %arg6[%c0_i32_25, %c2_i32_24, %c0_i32_28] : memref<2x8x128xf32, #tpu.memory_space<vmem>> -> memref<1x1x128xf32, #tpu.memory_space<vmem>>
      %45 = tpu.memref_squeeze %44 : memref<1x1x128xf32, #tpu.memory_space<vmem>> -> memref<1x128xf32, #tpu.memory_space<vmem>>
      %46 = tpu.memref_slice %arg7[%c0_i32_26] : memref<2x!tpu.dma_semaphore, #tpu.memory_space<semaphore_mem>> -> memref<1x!tpu.dma_semaphore, #tpu.memory_space<semaphore_mem>>
      %47 = tpu.memref_squeeze %46 : memref<1x!tpu.dma_semaphore, #tpu.memory_space<semaphore_mem>> -> memref<!tpu.dma_semaphore, #tpu.memory_space<semaphore_mem>>
      tpu.enqueue_dma source(%43 : memref<1x128xf32, #tpu.memory_space<any>>) target(%45 : memref<1x128xf32, #tpu.memory_space<vmem>>) target_semaphore(%47 : memref<!tpu.dma_semaphore, #tpu.memory_space<semaphore_mem>>)
      %c3_i32 = arith.constant 3 : i32
      %48 = arith.addi %23, %c3_i32 : i32
      %49 = arith.index_cast %48 : i32 to index
      %50 = memref.load %arg2[%49] : memref<16xi32, #tpu.memory_space<smem>>
      %c0_i32_29 = arith.constant 0 : i32
      %c0_i32_30 = arith.constant 0 : i32
      %c0_i32_31 = arith.constant 0 : i32
      %51 = tpu.memref_slice %arg3[%50, %c0_i32_31] : memref<64x128xf32, #tpu.memory_space<any>> -> memref<1x128xf32, #tpu.memory_space<any>>
      %c0_i32_32 = arith.constant 0 : i32
      %52 = tpu.memref_slice %arg6[%c0_i32_29, %c3_i32, %c0_i32_32] : memref<2x8x128xf32, #tpu.memory_space<vmem>> -> memref<1x1x128xf32, #tpu.memory_space<vmem>>
      %53 = tpu.memref_squeeze %52 : memref<1x1x128xf32, #tpu.memory_space<vmem>> -> memref<1x128xf32, #tpu.memory_space<vmem>>
      %54 = tpu.memref_slice %arg7[%c0_i32_30] : memref<2x!tpu.dma_semaphore, #tpu.memory_space<semaphore_mem>> -> memref<1x!tpu.dma_semaphore, #tpu.memory_space<semaphore_mem>>
      %55 = tpu.memref_squeeze %54 : memref<1x!tpu.dma_semaphore, #tpu.memory_space<semaphore_mem>> -> memref<!tpu.dma_semaphore, #tpu.memory_space<semaphore_mem>>
      tpu.enqueue_dma source(%51 : memref<1x128xf32, #tpu.memory_space<any>>) target(%53 : memref<1x128xf32, #tpu.memory_space<vmem>>) target_semaphore(%55 : memref<!tpu.dma_semaphore, #tpu.memory_space<semaphore_mem>>)
      %c4_i32 = arith.constant 4 : i32
      %56 = arith.addi %23, %c4_i32 : i32
      %57 = arith.index_cast %56 : i32 to index
      %58 = memref.load %arg2[%57] : memref<16xi32, #tpu.memory_space<smem>>
      %c0_i32_33 = arith.constant 0 : i32
      %c0_i32_34 = arith.constant 0 : i32
      %c0_i32_35 = arith.constant 0 : i32
      %59 = tpu.memref_slice %arg3[%58, %c0_i32_35] : memref<64x128xf32, #tpu.memory_space<any>> -> memref<1x128xf32, #tpu.memory_space<any>>
      %c0_i32_36 = arith.constant 0 : i32
      %60 = tpu.memref_slice %arg6[%c0_i32_33, %c4_i32, %c0_i32_36] : memref<2x8x128xf32, #tpu.memory_space<vmem>> -> memref<1x1x128xf32, #tpu.memory_space<vmem>>
      %61 = tpu.memref_squeeze %60 : memref<1x1x128xf32, #tpu.memory_space<vmem>> -> memref<1x128xf32, #tpu.memory_space<vmem>>
      %62 = tpu.memref_slice %arg7[%c0_i32_34] : memref<2x!tpu.dma_semaphore, #tpu.memory_space<semaphore_mem>> -> memref<1x!tpu.dma_semaphore, #tpu.memory_space<semaphore_mem>>
      %63 = tpu.memref_squeeze %62 : memref<1x!tpu.dma_semaphore, #tpu.memory_space<semaphore_mem>> -> memref<!tpu.dma_semaphore, #tpu.memory_space<semaphore_mem>>
      tpu.enqueue_dma source(%59 : memref<1x128xf32, #tpu.memory_space<any>>) target(%61 : memref<1x128xf32, #tpu.memory_space<vmem>>) target_semaphore(%63 : memref<!tpu.dma_semaphore, #tpu.memory_space<semaphore_mem>>)
      %c5_i32 = arith.constant 5 : i32
      %64 = arith.addi %23, %c5_i32 : i32
      %65 = arith.index_cast %64 : i32 to index
      %66 = memref.load %arg2[%65] : memref<16xi32, #tpu.memory_space<smem>>
      %c0_i32_37 = arith.constant 0 : i32
      %c0_i32_38 = arith.constant 0 : i32
      %c0_i32_39 = arith.constant 0 : i32
      %67 = tpu.memref_slice %arg3[%66, %c0_i32_39] : memref<64x128xf32, #tpu.memory_space<any>> -> memref<1x128xf32, #tpu.memory_space<any>>
      %c0_i32_40 = arith.constant 0 : i32
      %68 = tpu.memref_slice %arg6[%c0_i32_37, %c5_i32, %c0_i32_40] : memref<2x8x128xf32, #tpu.memory_space<vmem>> -> memref<1x1x128xf32, #tpu.memory_space<vmem>>
      %69 = tpu.memref_squeeze %68 : memref<1x1x128xf32, #tpu.memory_space<vmem>> -> memref<1x128xf32, #tpu.memory_space<vmem>>
      %70 = tpu.memref_slice %arg7[%c0_i32_38] : memref<2x!tpu.dma_semaphore, #tpu.memory_space<semaphore_mem>> -> memref<1x!tpu.dma_semaphore, #tpu.memory_space<semaphore_mem>>
      %71 = tpu.memref_squeeze %70 : memref<1x!tpu.dma_semaphore, #tpu.memory_space<semaphore_mem>> -> memref<!tpu.dma_semaphore, #tpu.memory_space<semaphore_mem>>
      tpu.enqueue_dma source(%67 : memref<1x128xf32, #tpu.memory_space<any>>) target(%69 : memref<1x128xf32, #tpu.memory_space<vmem>>) target_semaphore(%71 : memref<!tpu.dma_semaphore, #tpu.memory_space<semaphore_mem>>)
      %c6_i32 = arith.constant 6 : i32
      %72 = arith.addi %23, %c6_i32 : i32
      %73 = arith.index_cast %72 : i32 to index
      %74 = memref.load %arg2[%73] : memref<16xi32, #tpu.memory_space<smem>>
      %c0_i32_41 = arith.constant 0 : i32
      %c0_i32_42 = arith.constant 0 : i32
      %c0_i32_43 = arith.constant 0 : i32
      %75 = tpu.memref_slice %arg3[%74, %c0_i32_43] : memref<64x128xf32, #tpu.memory_space<any>> -> memref<1x128xf32, #tpu.memory_space<any>>
      %c0_i32_44 = arith.constant 0 : i32
      %76 = tpu.memref_slice %arg6[%c0_i32_41, %c6_i32, %c0_i32_44] : memref<2x8x128xf32, #tpu.memory_space<vmem>> -> memref<1x1x128xf32, #tpu.memory_space<vmem>>
      %77 = tpu.memref_squeeze %76 : memref<1x1x128xf32, #tpu.memory_space<vmem>> -> memref<1x128xf32, #tpu.memory_space<vmem>>
      %78 = tpu.memref_slice %arg7[%c0_i32_42] : memref<2x!tpu.dma_semaphore, #tpu.memory_space<semaphore_mem>> -> memref<1x!tpu.dma_semaphore, #tpu.memory_space<semaphore_mem>>
      %79 = tpu.memref_squeeze %78 : memref<1x!tpu.dma_semaphore, #tpu.memory_space<semaphore_mem>> -> memref<!tpu.dma_semaphore, #tpu.memory_space<semaphore_mem>>
      tpu.enqueue_dma source(%75 : memref<1x128xf32, #tpu.memory_space<any>>) target(%77 : memref<1x128xf32, #tpu.memory_space<vmem>>) target_semaphore(%79 : memref<!tpu.dma_semaphore, #tpu.memory_space<semaphore_mem>>)
      %c7_i32 = arith.constant 7 : i32
      %80 = arith.addi %23, %c7_i32 : i32
      %81 = arith.index_cast %80 : i32 to index
      %82 = memref.load %arg2[%81] : memref<16xi32, #tpu.memory_space<smem>>
      %c0_i32_45 = arith.constant 0 : i32
      %c0_i32_46 = arith.constant 0 : i32
      %c0_i32_47 = arith.constant 0 : i32
      %83 = tpu.memref_slice %arg3[%82, %c0_i32_47] : memref<64x128xf32, #tpu.memory_space<any>> -> memref<1x128xf32, #tpu.memory_space<any>>
      %c0_i32_48 = arith.constant 0 : i32
      %84 = tpu.memref_slice %arg6[%c0_i32_45, %c7_i32, %c0_i32_48] : memref<2x8x128xf32, #tpu.memory_space<vmem>> -> memref<1x1x128xf32, #tpu.memory_space<vmem>>
      %85 = tpu.memref_squeeze %84 : memref<1x1x128xf32, #tpu.memory_space<vmem>> -> memref<1x128xf32, #tpu.memory_space<vmem>>
      %86 = tpu.memref_slice %arg7[%c0_i32_46] : memref<2x!tpu.dma_semaphore, #tpu.memory_space<semaphore_mem>> -> memref<1x!tpu.dma_semaphore, #tpu.memory_space<semaphore_mem>>
      %87 = tpu.memref_squeeze %86 : memref<1x!tpu.dma_semaphore, #tpu.memory_space<semaphore_mem>> -> memref<!tpu.dma_semaphore, #tpu.memory_space<semaphore_mem>>
      tpu.enqueue_dma source(%83 : memref<1x128xf32, #tpu.memory_space<any>>) target(%85 : memref<1x128xf32, #tpu.memory_space<vmem>>) target_semaphore(%87 : memref<!tpu.dma_semaphore, #tpu.memory_space<semaphore_mem>>)
      %c8_i32_49 = arith.constant 8 : i32
    } else {
    }
    %c1_i32 = arith.constant 1 : i32
    %3 = arith.addi %arg1, %c1_i32 : i32
    %c2_i32 = arith.constant 2 : i32
    %4 = arith.cmpi slt, %3, %c2_i32 : i32
    %5 = arith.extui %4 : i1 to i32
    %c0_i32_1 = arith.constant 0 : i32
    %6 = arith.cmpi ne, %5, %c0_i32_1 : i32
    scf.if %6 {
      %c1_i32_13 = arith.constant 1 : i32
      %22 = arith.addi %arg1, %c1_i32_13 : i32
      %c1_i32_14 = arith.constant 1 : i32
      %23 = arith.addi %arg1, %c1_i32_14 : i32
      %c1_i32_15 = arith.constant 1 : i32
      %24 = arith.andi %23, %c1_i32_15 : i32
      %c8_i32 = arith.constant 8 : i32
      %25 = arith.muli %22, %c8_i32 : i32
      %c8_i32_16 = arith.constant 8 : i32
      %26 = arith.muli %arg0, %c8_i32_16 : i32
      %27 = arith.addi %25, %26 : i32
      %c0_i32_17 = arith.constant 0 : i32
      %28 = arith.addi %27, %c0_i32_17 : i32
      %29 = arith.index_cast %28 : i32 to index
      %30 = memref.load %arg2[%29] : memref<16xi32, #tpu.memory_space<smem>>
      %c0_i32_18 = arith.constant 0 : i32
      %31 = tpu.memref_slice %arg3[%30, %c0_i32_18] : memref<64x128xf32, #tpu.memory_space<any>> -> memref<1x128xf32, #tpu.memory_space<any>>
      %c0_i32_19 = arith.constant 0 : i32
      %32 = tpu.memref_slice %arg6[%24, %c0_i32_17, %c0_i32_19] : memref<2x8x128xf32, #tpu.memory_space<vmem>> -> memref<1x1x128xf32, #tpu.memory_space<vmem>>
      %33 = tpu.memref_squeeze %32 : memref<1x1x128xf32, #tpu.memory_space<vmem>> -> memref<1x128xf32, #tpu.memory_space<vmem>>
      %34 = tpu.memref_slice %arg7[%24] : memref<2x!tpu.dma_semaphore, #tpu.memory_space<semaphore_mem>> -> memref<1x!tpu.dma_semaphore, #tpu.memory_space<semaphore_mem>>
      %35 = tpu.memref_squeeze %34 : memref<1x!tpu.dma_semaphore, #tpu.memory_space<semaphore_mem>> -> memref<!tpu.dma_semaphore, #tpu.memory_space<semaphore_mem>>
      tpu.enqueue_dma source(%31 : memref<1x128xf32, #tpu.memory_space<any>>) target(%33 : memref<1x128xf32, #tpu.memory_space<vmem>>) target_semaphore(%35 : memref<!tpu.dma_semaphore, #tpu.memory_space<semaphore_mem>>)
      %c1_i32_20 = arith.constant 1 : i32
      %36 = arith.addi %27, %c1_i32_20 : i32
      %37 = arith.index_cast %36 : i32 to index
      %38 = memref.load %arg2[%37] : memref<16xi32, #tpu.memory_space<smem>>
      %c0_i32_21 = arith.constant 0 : i32
      %39 = tpu.memref_slice %arg3[%38, %c0_i32_21] : memref<64x128xf32, #tpu.memory_space<any>> -> memref<1x128xf32, #tpu.memory_space<any>>
      %c0_i32_22 = arith.constant 0 : i32
      %40 = tpu.memref_slice %arg6[%24, %c1_i32_20, %c0_i32_22] : memref<2x8x128xf32, #tpu.memory_space<vmem>> -> memref<1x1x128xf32, #tpu.memory_space<vmem>>
      %41 = tpu.memref_squeeze %40 : memref<1x1x128xf32, #tpu.memory_space<vmem>> -> memref<1x128xf32, #tpu.memory_space<vmem>>
      %42 = tpu.memref_slice %arg7[%24] : memref<2x!tpu.dma_semaphore, #tpu.memory_space<semaphore_mem>> -> memref<1x!tpu.dma_semaphore, #tpu.memory_space<semaphore_mem>>
      %43 = tpu.memref_squeeze %42 : memref<1x!tpu.dma_semaphore, #tpu.memory_space<semaphore_mem>> -> memref<!tpu.dma_semaphore, #tpu.memory_space<semaphore_mem>>
      tpu.enqueue_dma source(%39 : memref<1x128xf32, #tpu.memory_space<any>>) target(%41 : memref<1x128xf32, #tpu.memory_space<vmem>>) target_semaphore(%43 : memref<!tpu.dma_semaphore, #tpu.memory_space<semaphore_mem>>)
      %c2_i32_23 = arith.constant 2 : i32
      %44 = arith.addi %27, %c2_i32_23 : i32
      %45 = arith.index_cast %44 : i32 to index
      %46 = memref.load %arg2[%45] : memref<16xi32, #tpu.memory_space<smem>>
      %c0_i32_24 = arith.constant 0 : i32
      %47 = tpu.memref_slice %arg3[%46, %c0_i32_24] : memref<64x128xf32, #tpu.memory_space<any>> -> memref<1x128xf32, #tpu.memory_space<any>>
      %c0_i32_25 = arith.constant 0 : i32
      %48 = tpu.memref_slice %arg6[%24, %c2_i32_23, %c0_i32_25] : memref<2x8x128xf32, #tpu.memory_space<vmem>> -> memref<1x1x128xf32, #tpu.memory_space<vmem>>
      %49 = tpu.memref_squeeze %48 : memref<1x1x128xf32, #tpu.memory_space<vmem>> -> memref<1x128xf32, #tpu.memory_space<vmem>>
      %50 = tpu.memref_slice %arg7[%24] : memref<2x!tpu.dma_semaphore, #tpu.memory_space<semaphore_mem>> -> memref<1x!tpu.dma_semaphore, #tpu.memory_space<semaphore_mem>>
      %51 = tpu.memref_squeeze %50 : memref<1x!tpu.dma_semaphore, #tpu.memory_space<semaphore_mem>> -> memref<!tpu.dma_semaphore, #tpu.memory_space<semaphore_mem>>
      tpu.enqueue_dma source(%47 : memref<1x128xf32, #tpu.memory_space<any>>) target(%49 : memref<1x128xf32, #tpu.memory_space<vmem>>) target_semaphore(%51 : memref<!tpu.dma_semaphore, #tpu.memory_space<semaphore_mem>>)
      %c3_i32 = arith.constant 3 : i32
      %52 = arith.addi %27, %c3_i32 : i32
      %53 = arith.index_cast %52 : i32 to index
      %54 = memref.load %arg2[%53] : memref<16xi32, #tpu.memory_space<smem>>
      %c0_i32_26 = arith.constant 0 : i32
      %55 = tpu.memref_slice %arg3[%54, %c0_i32_26] : memref<64x128xf32, #tpu.memory_space<any>> -> memref<1x128xf32, #tpu.memory_space<any>>
      %c0_i32_27 = arith.constant 0 : i32
      %56 = tpu.memref_slice %arg6[%24, %c3_i32, %c0_i32_27] : memref<2x8x128xf32, #tpu.memory_space<vmem>> -> memref<1x1x128xf32, #tpu.memory_space<vmem>>
      %57 = tpu.memref_squeeze %56 : memref<1x1x128xf32, #tpu.memory_space<vmem>> -> memref<1x128xf32, #tpu.memory_space<vmem>>
      %58 = tpu.memref_slice %arg7[%24] : memref<2x!tpu.dma_semaphore, #tpu.memory_space<semaphore_mem>> -> memref<1x!tpu.dma_semaphore, #tpu.memory_space<semaphore_mem>>
      %59 = tpu.memref_squeeze %58 : memref<1x!tpu.dma_semaphore, #tpu.memory_space<semaphore_mem>> -> memref<!tpu.dma_semaphore, #tpu.memory_space<semaphore_mem>>
      tpu.enqueue_dma source(%55 : memref<1x128xf32, #tpu.memory_space<any>>) target(%57 : memref<1x128xf32, #tpu.memory_space<vmem>>) target_semaphore(%59 : memref<!tpu.dma_semaphore, #tpu.memory_space<semaphore_mem>>)
      %c4_i32 = arith.constant 4 : i32
      %60 = arith.addi %27, %c4_i32 : i32
      %61 = arith.index_cast %60 : i32 to index
      %62 = memref.load %arg2[%61] : memref<16xi32, #tpu.memory_space<smem>>
      %c0_i32_28 = arith.constant 0 : i32
      %63 = tpu.memref_slice %arg3[%62, %c0_i32_28] : memref<64x128xf32, #tpu.memory_space<any>> -> memref<1x128xf32, #tpu.memory_space<any>>
      %c0_i32_29 = arith.constant 0 : i32
      %64 = tpu.memref_slice %arg6[%24, %c4_i32, %c0_i32_29] : memref<2x8x128xf32, #tpu.memory_space<vmem>> -> memref<1x1x128xf32, #tpu.memory_space<vmem>>
      %65 = tpu.memref_squeeze %64 : memref<1x1x128xf32, #tpu.memory_space<vmem>> -> memref<1x128xf32, #tpu.memory_space<vmem>>
      %66 = tpu.memref_slice %arg7[%24] : memref<2x!tpu.dma_semaphore, #tpu.memory_space<semaphore_mem>> -> memref<1x!tpu.dma_semaphore, #tpu.memory_space<semaphore_mem>>
      %67 = tpu.memref_squeeze %66 : memref<1x!tpu.dma_semaphore, #tpu.memory_space<semaphore_mem>> -> memref<!tpu.dma_semaphore, #tpu.memory_space<semaphore_mem>>
      tpu.enqueue_dma source(%63 : memref<1x128xf32, #tpu.memory_space<any>>) target(%65 : memref<1x128xf32, #tpu.memory_space<vmem>>) target_semaphore(%67 : memref<!tpu.dma_semaphore, #tpu.memory_space<semaphore_mem>>)
      %c5_i32 = arith.constant 5 : i32
      %68 = arith.addi %27, %c5_i32 : i32
      %69 = arith.index_cast %68 : i32 to index
      %70 = memref.load %arg2[%69] : memref<16xi32, #tpu.memory_space<smem>>
      %c0_i32_30 = arith.constant 0 : i32
      %71 = tpu.memref_slice %arg3[%70, %c0_i32_30] : memref<64x128xf32, #tpu.memory_space<any>> -> memref<1x128xf32, #tpu.memory_space<any>>
      %c0_i32_31 = arith.constant 0 : i32
      %72 = tpu.memref_slice %arg6[%24, %c5_i32, %c0_i32_31] : memref<2x8x128xf32, #tpu.memory_space<vmem>> -> memref<1x1x128xf32, #tpu.memory_space<vmem>>
      %73 = tpu.memref_squeeze %72 : memref<1x1x128xf32, #tpu.memory_space<vmem>> -> memref<1x128xf32, #tpu.memory_space<vmem>>
      %74 = tpu.memref_slice %arg7[%24] : memref<2x!tpu.dma_semaphore, #tpu.memory_space<semaphore_mem>> -> memref<1x!tpu.dma_semaphore, #tpu.memory_space<semaphore_mem>>
      %75 = tpu.memref_squeeze %74 : memref<1x!tpu.dma_semaphore, #tpu.memory_space<semaphore_mem>> -> memref<!tpu.dma_semaphore, #tpu.memory_space<semaphore_mem>>
      tpu.enqueue_dma source(%71 : memref<1x128xf32, #tpu.memory_space<any>>) target(%73 : memref<1x128xf32, #tpu.memory_space<vmem>>) target_semaphore(%75 : memref<!tpu.dma_semaphore, #tpu.memory_space<semaphore_mem>>)
      %c6_i32 = arith.constant 6 : i32
      %76 = arith.addi %27, %c6_i32 : i32
      %77 = arith.index_cast %76 : i32 to index
      %78 = memref.load %arg2[%77] : memref<16xi32, #tpu.memory_space<smem>>
      %c0_i32_32 = arith.constant 0 : i32
      %79 = tpu.memref_slice %arg3[%78, %c0_i32_32] : memref<64x128xf32, #tpu.memory_space<any>> -> memref<1x128xf32, #tpu.memory_space<any>>
      %c0_i32_33 = arith.constant 0 : i32
      %80 = tpu.memref_slice %arg6[%24, %c6_i32, %c0_i32_33] : memref<2x8x128xf32, #tpu.memory_space<vmem>> -> memref<1x1x128xf32, #tpu.memory_space<vmem>>
      %81 = tpu.memref_squeeze %80 : memref<1x1x128xf32, #tpu.memory_space<vmem>> -> memref<1x128xf32, #tpu.memory_space<vmem>>
      %82 = tpu.memref_slice %arg7[%24] : memref<2x!tpu.dma_semaphore, #tpu.memory_space<semaphore_mem>> -> memref<1x!tpu.dma_semaphore, #tpu.memory_space<semaphore_mem>>
      %83 = tpu.memref_squeeze %82 : memref<1x!tpu.dma_semaphore, #tpu.memory_space<semaphore_mem>> -> memref<!tpu.dma_semaphore, #tpu.memory_space<semaphore_mem>>
      tpu.enqueue_dma source(%79 : memref<1x128xf32, #tpu.memory_space<any>>) target(%81 : memref<1x128xf32, #tpu.memory_space<vmem>>) target_semaphore(%83 : memref<!tpu.dma_semaphore, #tpu.memory_space<semaphore_mem>>)
      %c7_i32 = arith.constant 7 : i32
      %84 = arith.addi %27, %c7_i32 : i32
      %85 = arith.index_cast %84 : i32 to index
      %86 = memref.load %arg2[%85] : memref<16xi32, #tpu.memory_space<smem>>
      %c0_i32_34 = arith.constant 0 : i32
      %87 = tpu.memref_slice %arg3[%86, %c0_i32_34] : memref<64x128xf32, #tpu.memory_space<any>> -> memref<1x128xf32, #tpu.memory_space<any>>
      %c0_i32_35 = arith.constant 0 : i32
      %88 = tpu.memref_slice %arg6[%24, %c7_i32, %c0_i32_35] : memref<2x8x128xf32, #tpu.memory_space<vmem>> -> memref<1x1x128xf32, #tpu.memory_space<vmem>>
      %89 = tpu.memref_squeeze %88 : memref<1x1x128xf32, #tpu.memory_space<vmem>> -> memref<1x128xf32, #tpu.memory_space<vmem>>
      %90 = tpu.memref_slice %arg7[%24] : memref<2x!tpu.dma_semaphore, #tpu.memory_space<semaphore_mem>> -> memref<1x!tpu.dma_semaphore, #tpu.memory_space<semaphore_mem>>
      %91 = tpu.memref_squeeze %90 : memref<1x!tpu.dma_semaphore, #tpu.memory_space<semaphore_mem>> -> memref<!tpu.dma_semaphore, #tpu.memory_space<semaphore_mem>>
      tpu.enqueue_dma source(%87 : memref<1x128xf32, #tpu.memory_space<any>>) target(%89 : memref<1x128xf32, #tpu.memory_space<vmem>>) target_semaphore(%91 : memref<!tpu.dma_semaphore, #tpu.memory_space<semaphore_mem>>)
      %c8_i32_36 = arith.constant 8 : i32
    } else {
    }
    %c1_i32_2 = arith.constant 1 : i32
    %7 = arith.andi %arg1, %c1_i32_2 : i32
    %c0_i32_3 = arith.constant 0 : i32
    %c0_i32_4 = arith.constant 0 : i32
    %8 = tpu.memref_slice %arg6[%7, %c0_i32_3, %c0_i32_4] : memref<2x8x128xf32, #tpu.memory_space<vmem>> -> memref<1x8x128xf32, #tpu.memory_space<vmem>>
    %9 = tpu.memref_squeeze %8 : memref<1x8x128xf32, #tpu.memory_space<vmem>> -> memref<8x128xf32, #tpu.memory_space<vmem>>
    %c0_i32_5 = arith.constant 0 : i32
    %c0_i32_6 = arith.constant 0 : i32
    %10 = tpu.memref_slice %arg6[%7, %c0_i32_5, %c0_i32_6] : memref<2x8x128xf32, #tpu.memory_space<vmem>> -> memref<1x8x128xf32, #tpu.memory_space<vmem>>
    %11 = tpu.memref_squeeze %10 : memref<1x8x128xf32, #tpu.memory_space<vmem>> -> memref<8x128xf32, #tpu.memory_space<vmem>>
    %12 = tpu.memref_slice %arg7[%7] : memref<2x!tpu.dma_semaphore, #tpu.memory_space<semaphore_mem>> -> memref<1x!tpu.dma_semaphore, #tpu.memory_space<semaphore_mem>>
    %13 = tpu.memref_squeeze %12 : memref<1x!tpu.dma_semaphore, #tpu.memory_space<semaphore_mem>> -> memref<!tpu.dma_semaphore, #tpu.memory_space<semaphore_mem>>
    tpu.wait_dma2 semaphore(%13 : memref<!tpu.dma_semaphore, #tpu.memory_space<semaphore_mem>>) src(%9 : memref<8x128xf32, #tpu.memory_space<vmem>>) dst(%11 : memref<8x128xf32, #tpu.memory_space<vmem>>)
    %14 = arith.index_cast %7 : i32 to index
    %c0 = arith.constant 0 : index
    %c0_7 = arith.constant 0 : index
    %15 = vector.load %arg6[%14, %c0, %c0_7] : memref<2x8x128xf32, #tpu.memory_space<vmem>>, vector<1x8x128xf32>
    %16 = vector.shape_cast %15 : vector<1x8x128xf32> to vector<8x128xf32>
    %c0_8 = arith.constant 0 : index
    %c0_9 = arith.constant 0 : index
    %17 = vector.load %arg4[%c0_8, %c0_9] : memref<8x128xf32, #tpu.memory_space<vmem>>, vector<8x128xf32>
    %18 = arith.addf %16, %17 : vector<8x128xf32>
    %c0_10 = arith.constant 0 : index
    %c0_11 = arith.constant 0 : index
    %c0_12 = arith.constant 0 : index
    %19 = vector.load %arg5[%c0_10, %c0_11, %c0_12] : memref<1x8x128xf32, #tpu.memory_space<vmem>>, vector<1x8x128xf32>
    %20 = vector.shape_cast %19 : vector<1x8x128xf32> to vector<8x128xf32>
    %21 = vector.shape_cast %18 : vector<8x128xf32> to vector<1x8x128xf32>
    tpu.vector_store %arg5[%c0_10, %c0_11, %c0_12], %21 {strides = array<i32>} : memref<1x8x128xf32, #tpu.memory_space<vmem>>, vector<1x8x128xf32>,
    return
  }
  func.func @transform_1(%arg0: i32, %arg1: i32, %arg2: memref<16xi32, #tpu.memory_space<smem>>) -> (i32, i32) {
    %c0_i32 = arith.constant 0 : i32
    %c0_i32_0 = arith.constant 0 : i32
    return %arg0, %c0_i32 : i32, i32
  }
  func.func @transform_2(%arg0: i32, %arg1: i32, %arg2: memref<16xi32, #tpu.memory_space<smem>>) -> (i32, i32, i32) {
    %c0_i32 = arith.constant 0 : i32
    %c0_i32_0 = arith.constant 0 : i32
    return %arg1, %arg0, %c0_i32 : i32, i32, i32
  }
}

</mosaic_0001>

<llo_original>
// kernel: tpu_custom_call.1
$region0: #{tpu_custom_call.1}
  #allocation0 [shape = 'u32[]', space=smem, size = 0x4, offset = 0x4, fixed_abs, tag = 'smem constant byte address 0x4 - core index']
  #allocation1 [shape = 'u32[144,128]{1,0:T(1,128)}', space=vmem, size = 0x12000, scoped, tag = 'internal scratch']
  #allocation2 [shape = 'f32[2,8,128]{2,1,0:T(8,128)}', space=vmem, size = 0x2000, scoped, tag = 'scratch operand']
  #allocation3 [shape = 's32[2]{0}', space=sflag, size = 0x8, scoped, tag = 'scratch operand']
  #allocation4 [shape = 's32[1]{0}', space=sflag, size = 0x4, scoped, tag = 'scoped memory for tpu_custom_call.1']
  #allocation5 [shape = 'u8[512]{0}', space=smem, size = 0x200, scoped, tag = 'prefetched SMEM operand 0']
  #allocation10 [shape = 's32[]', space=sflag, size = 0x4, offset = 0, fixed_abs, tag = 'sflag constant byte address 0x0 - dummy sync flag']
  #allocation11 [shape = 's32[]', space=sflag, size = 0x4, offset = 0, fixed_abs, tag = 'sflag constant byte address 0x0 - dummy sync flag']
  #allocation12 [shape = 'u32[]', space=smem, size = 0x4, offset = 0x44, fixed_abs, tag = 'smem constant byte address 0x44 - assertion arg 0']
  #allocation13 [shape = 'u32[]', space=smem, size = 0x4, offset = 0x48, fixed_abs, tag = 'smem constant byte address 0x48 - assertion arg 1']
  #allocation14 [shape = 's32[]', space=sflag, size = 0x4, offset = 0, fixed_abs, tag = 'sflag constant byte address 0x0 - dummy sync flag']
  #allocation15 [shape = 's32[]', space=sflag, size = 0x4, offset = 0, fixed_abs, tag = 'sflag constant byte address 0x0 - dummy sync flag']
  #allocation16 [shape = 's32[]', space=sflag, size = 0x4, offset = 0, fixed_abs, tag = 'sflag constant byte address 0x0 - dummy sync flag']
  #allocation17 [shape = 's32[]', space=sflag, size = 0x4, offset = 0, fixed_abs, tag = 'sflag constant byte address 0x0 - dummy sync flag']
  #allocation18 [shape = 's32[]', space=sflag, size = 0x4, offset = 0, fixed_abs, tag = 'sflag constant byte address 0x0 - dummy sync flag']
  #allocation19 [shape = 's32[]', space=sflag, size = 0x4, offset = 0, fixed_abs, tag = 'sflag constant byte address 0x0 - dummy sync flag']
  #allocation20 [shape = 's32[]', space=sflag, size = 0x4, offset = 0, fixed_abs, tag = 'sflag constant byte address 0x0 - dummy sync flag']
  #allocation21 [shape = 's32[]', space=sflag, size = 0x4, offset = 0, fixed_abs, tag = 'sflag constant byte address 0x0 - dummy sync flag']
  #allocation22 [shape = 's32[]', space=sflag, size = 0x4, offset = 0, fixed_abs, tag = 'sflag constant byte address 0x0 - dummy sync flag']
  #allocation23 [shape = 's32[]', space=sflag, size = 0x4, offset = 0, fixed_abs, tag = 'sflag constant byte address 0x0 - dummy sync flag']
  #allocation24 [shape = 's32[]', space=sflag, size = 0x4, offset = 0, fixed_abs, tag = 'sflag constant byte address 0x0 - dummy sync flag']
  #allocation25 [shape = 's32[]', space=sflag, size = 0x4, offset = 0, fixed_abs, tag = 'sflag constant byte address 0x0 - dummy sync flag']
  #allocation26 [shape = 's32[]', space=sflag, size = 0x4, offset = 0, fixed_abs, tag = 'sflag constant byte address 0x0 - dummy sync flag']
  #allocation27 [shape = 's32[]', space=sflag, size = 0x4, offset = 0, fixed_abs, tag = 'sflag constant byte address 0x0 - dummy sync flag']
  #allocation28 [shape = 's32[]', space=sflag, size = 0x4, offset = 0, fixed_abs, tag = 'sflag constant byte address 0x0 - dummy sync flag']
  #allocation29 [shape = 's32[]', space=sflag, size = 0x4, offset = 0, fixed_abs, tag = 'sflag constant byte address 0x0 - dummy sync flag']
  #allocation30 [shape = 's32[]', space=sflag, size = 0x4, offset = 0, fixed_abs, tag = 'sflag constant byte address 0x0 - dummy sync flag']
  #allocation31 [shape = 's32[]', space=sflag, size = 0x4, offset = 0, fixed_abs, tag = 'sflag constant byte address 0x0 - dummy sync flag']
  #allocation32 [shape = 's32[]', space=sflag, size = 0x4, offset = 0, fixed_abs, tag = 'sflag constant byte address 0x0 - dummy sync flag']
  #allocation33 [shape = 's32[]', space=sflag, size = 0x4, offset = 0, fixed_abs, tag = 'sflag constant byte address 0x0 - dummy sync flag']
  #allocation34 [shape = 's32[]', space=sflag, size = 0x4, offset = 0, fixed_abs, tag = 'sflag constant byte address 0x0 - dummy sync flag']
  #allocation35 [shape = 's32[]', space=sflag, size = 0x4, offset = 0, fixed_abs, tag = 'sflag constant byte address 0x0 - dummy sync flag']
  #allocation36 [shape = 's32[]', space=sflag, size = 0x4, offset = 0, fixed_abs, tag = 'sflag constant byte address 0x0 - dummy sync flag']
  #allocation37 [shape = 's32[]', space=sflag, size = 0x4, offset = 0, fixed_abs, tag = 'sflag constant byte address 0x0 - dummy sync flag']
  #allocation38 [shape = 's32[]', space=sflag, size = 0x4, offset = 0, fixed_abs, tag = 'sflag constant byte address 0x0 - dummy sync flag']
  #allocation39 [shape = 's32[]', space=sflag, size = 0x4, offset = 0, fixed_abs, tag = 'sflag constant byte address 0x0 - dummy sync flag']
  #allocation40 [shape = 's32[]', space=sflag, size = 0x4, offset = 0, fixed_abs, tag = 'sflag constant byte address 0x0 - dummy sync flag']
  #allocation41 [shape = 's32[]', space=sflag, size = 0x4, offset = 0, fixed_abs, tag = 'sflag constant byte address 0x0 - dummy sync flag']
  #allocation42 [shape = 's32[]', space=sflag, size = 0x4, offset = 0, fixed_abs, tag = 'sflag constant byte address 0x0 - dummy sync flag']
  #allocation43 [shape = 's32[]', space=sflag, size = 0x4, offset = 0, fixed_abs, tag = 'sflag constant byte address 0x0 - dummy sync flag']
  %s0 = inlined_call_operand.hbm [shape: s32[16], index: 0, kind: input, shape index: {}]
  %s1 = inlined_call_operand.hbm [shape: f32[64,128], index: 1, kind: input, shape index: {}]
  %s2 = inlined_call_operand.hbm [shape: f32[8,128], index: 2, kind: input, shape index: {}]
  %s3 = inlined_call_operand.hbm [shape: f32[2,8,128], index: 3, kind: output, shape index: {}]
  %s4 = sld [smem:[#allocation0]]
  $region113: #{tpu_custom_call.1} parent=0
    _
  %s6 = ssub.s32 1, %s4
  %s7 = scalar_select 0, %s6, %s4
  %9 = dma.hbm_to_smem %s0, 16, [#allocation5], [#allocation4]
  %10 = dma.done [#allocation4], 16
  %11 = sfence
  $region1: #{tpu_custom_call.1} parent=0
    #allocation6 [shape = 'u8[4096]{0}', space=vmem, size = 0x1000, scoped, tag = 'input window, operand 2, single buffered']
    #allocation7 [shape = 's32[2]{0}', space=sflag, size = 0x8, scoped, tag = 'scoped memory for tpu_custom_call.1']
    #allocation8 [shape = 's32[2]{0}', space=sflag, size = 0x8, scoped, tag = 'scoped memory for tpu_custom_call.1']
    #allocation9 [shape = 'u8[8192]{0}', space=vmem, size = 0x2000, scoped, tag = 'output window, operand 0']
    %12 = vsyncpa [#allocation7], 0
    %13 = vsyncpa [#allocation8], 0
    %s14 = scalar_lea.sflag [#allocation8], 1
    %15 = vsyncpa %s14, 0
    loop: start=0, step=1, limit=4
    $region2: #{tpu_custom_call.1} parent=1 // loop_pre_header
      _
    $region3: #{tpu_custom_call.1} parent=1 // loop_header
      %s17 = sphi 0, %s21
      %p18 = scmp.ge.s32.totalorder %s17, 4
      %s24 = sphi 0, %s36
      %s25 = sphi 0, %s32
      %s26 = sphi 0, %s24
      %s27 = sphi 0, %s25
      %s28 = sphi 0, %s26
      %s29 = sphi 0, %s27
      %s39 = sphi 0, %s41
      %s42 = sphi 0, %s39
      %s43 = sphi 0, %s42
      %s59 = sphi 0, %s43
      %s67 = sphi 0, %s69
      %s70 = sphi 0, %s67
      %s71 = sphi 0, %s70
      %s87 = sphi 0, %s71
    $region4: #{tpu_custom_call.1} parent=1 // loop_header_branch
      %20 = sbr.rel (%p18) target = $region8
    $region5: #{tpu_custom_call.1} parent=1 // loop_body
      %s22 = ssub.s32 %s17, 1
      %s23 = ssub.s32 %s17, 2
      %s30 = sadd.s32 1, %s25
      %p31 = scmp.ge.s32.totalorder %s30, 2
      %s32 = scalar_select %p31, 0, %s30
      %s33 = sadd.s32 1, %s24
      %s34 = scalar_select %p31, %s33, %s24
      %p35 = scmp.ge.s32.totalorder %s34, 1
      %s36 = scalar_select %p35, 0, %s34
      %s37 = ssub.s32 %s24, %s36
      %p38 = scmp.eq.s32.totalorder %s37, 0
      %s40 = sadd.s32 %s39, 1
      %s41 = scalar_select %p38, %s39, %s40
      %p44 = pneg %p38
      %p45 = scmp.eq.s32.totalorder %s17, 1
      %p46 = por %p44, %p45
      %p47 = scmp.ne.s32.totalorder %s39, %s42
      %p48 = scmp.eq.s32.totalorder %s17, 0
      %p49 = por %p47, %p48
      %p50 = scmp.ne.s32.totalorder %s39, %s42
      %p51 = scmp.eq.s32.totalorder %s22, 1
      %p52 = por %p50, %p51
      %p53 = scmp.ne.s32.totalorder %s42, %s43
      %p54 = scmp.eq.s32.totalorder %s22, 0
      %p55 = por %p53, %p54
      %p56 = scmp.ne.s32.totalorder %s42, %s43
      %p57 = scmp.eq.s32.totalorder %s23, 1
      %p58 = por %p56, %p57
      %p60 = scmp.ne.s32.totalorder %s43, %s59
      %p61 = scmp.eq.s32.totalorder %s23, 0
      %p62 = por %p60, %p61
      %s63 = ssub.s32 %s25, %s32
      %s64 = ssub.s32 %s24, %s36
      %s65 = sor.u32 %s63, %s64
      %p66 = scmp.eq.s32.totalorder %s65, 0
      %s68 = sadd.s32 %s67, 1
      %s69 = scalar_select %p66, %s67, %s68
      %p72 = pneg %p66
      %p73 = scmp.eq.s32.totalorder %s17, 1
      %p74 = por %p72, %p73
      %p75 = scmp.ne.s32.totalorder %s67, %s70
      %p76 = scmp.eq.s32.totalorder %s17, 0
      %p77 = por %p75, %p76
      %p78 = scmp.ne.s32.totalorder %s67, %s70
      %p79 = scmp.eq.s32.totalorder %s22, 1
      %p80 = por %p78, %p79
      %p81 = scmp.ne.s32.totalorder %s70, %s71
      %p82 = scmp.eq.s32.totalorder %s22, 0
      %p83 = por %p81, %p82
      %p84 = scmp.ne.s32.totalorder %s70, %s71
      %p85 = scmp.eq.s32.totalorder %s23, 1
      %p86 = por %p84, %p85
      %p88 = scmp.ne.s32.totalorder %s71, %s87
      %p89 = scmp.eq.s32.totalorder %s23, 0
      %p90 = por %p88, %p89
      %p91 = scmp.le.s32.totalorder 1, %s17
      %p92 = scmp.lt.s32.totalorder %s17, 3
      %p93 = pnand %p91, %p92
      %p94 = pneg %p93
      // Predicated region
      $region9: #{tpu_custom_call.1} parent=5 // pred_check
        _
      $region10: #{tpu_custom_call.1} parent=5 // pred_check_branch
        %96 = sbr.rel (%p93) target = $region12
      $region11: #{tpu_custom_call.1} parent=5 // pred_region
        %s97 = ssub.s32 %s17, 1
        // Predicated region
        $region13: #{tpu_custom_call.1} parent=11 // pred_check
          %p98 = pneg %p55
        $region14: #{tpu_custom_call.1} parent=11 // pred_check_branch
          %100 = sbr.rel (%p98) target = $region16
        $region15: #{tpu_custom_call.1} parent=11 // pred_region
          %s102 = ssub.s32 128, 128
          %103 = vsyncadd [#allocation7], %s102
          %s104 = smul.addr %s26, 128
          %s105 = scalar_lea.hbm %s2, %s104
          %s107 = sshll.u32 [#allocation6], 4
          %s108 = int_to_ptr.vmem [resolvable:$true] %s107
          %110 = dma.hbm_to_vmem [thread:$0]  %s105, 128, %s108, [#allocation7]
        $region16: #{tpu_custom_call.1} parent=11 // pred_fallthru
          _
      $region12: #{tpu_custom_call.1} parent=5 // pred_fallthru
        _
      %p111 = scmp.lt.s32.totalorder %s17, 2
      // Predicated region
      $region17: #{tpu_custom_call.1} parent=5 // pred_check
        %p112 = pneg %p111
      $region18: #{tpu_custom_call.1} parent=5 // pred_check_branch
        %114 = sbr.rel (%p112) target = $region20
      $region19: #{tpu_custom_call.1} parent=5 // pred_region
        _
      $region20: #{tpu_custom_call.1} parent=5 // pred_fallthru
        _
      %p115 = scmp.le.s32.totalorder 1, %s17
      %p116 = scmp.lt.s32.totalorder %s17, 3
      %p117 = pnand %p115, %p116
      %p118 = pneg %p117
      // Predicated region
      $region21: #{tpu_custom_call.1} parent=5 // pred_check
        _
      $region22: #{tpu_custom_call.1} parent=5 // pred_check_branch
        %120 = sbr.rel (%p117) target = $region24
      $region23: #{tpu_custom_call.1} parent=5 // pred_region
        %s121 = ssub.s32 %s17, 1
        // Predicated region
        $region25: #{tpu_custom_call.1} parent=23 // pred_check
          %p122 = pneg %p55
        $region26: #{tpu_custom_call.1} parent=23 // pred_check_branch
          %124 = sbr.rel (%p122) target = $region28
        $region27: #{tpu_custom_call.1} parent=23 // pred_region
          %125 = dma.done [#allocation7], 128
        $region28: #{tpu_custom_call.1} parent=23 // pred_fallthru
          _
        %p126 = pneg %p55
        %p127 = pneg %p52
        %p128 = pneg %p83
        %p129 = pneg %p80
        %s130 = sand.u32 %s70, 1
        %s131 = scalar_lea.sflag [#allocation8], %s130
        %s132 = sand.u32 %s70, 1
        %s133 = smul.addr %s132, 8
        %s134 = scalar_lea.vmem [#allocation9], %s133
        %p135 = scmp.eq.s32.totalorder %s27, 0
        // Predicated region
        $region29: #{tpu_custom_call.1} parent=23 // pred_check
          %p136 = pneg %p135
        $region30: #{tpu_custom_call.1} parent=23 // pred_check_branch
          %138 = sbr.rel (%p136) target = $region32
        $region31: #{tpu_custom_call.1} parent=23 // pred_region
          %s139 = smul.u32 %s26, 8
          %s140 = sld [smem:[#allocation5 + %s139]]
          %s141 = smul.addr %s140, 16
          %s142 = scalar_lea.hbm %s1, %s141
          // Predicated region
          $region33: #{tpu_custom_call.1} parent=31 // pred_check
            _
          $region34: #{tpu_custom_call.1} parent=31 // pred_check_branch
            %144 = sbr.rel target = $region36
          $region35: #{tpu_custom_call.1} parent=31 // pred_region
            %145 = sst [smem:[#allocation12]] [#allocation11]
            %146 = sst [smem:[#allocation13]] [#allocation10]
          $region36: #{tpu_custom_call.1} parent=31 // pred_fallthru
            _
          %148 = shalt.err (0)
          %s150 = sshll.u32 [#allocation2], 4
          %s151 = int_to_ptr.vmem [resolvable:$true] %s150
          %153 = dma.hbm_to_vmem [thread:$0]  %s142, 16, %s151, [#allocation3]
          %s154 = sadd.s32 %s139, 1
          %s155 = sld [smem:[#allocation5 + %s154]]
          %s156 = smul.addr %s155, 16
          %s157 = scalar_lea.hbm %s1, %s156
          %s158 = scalar_lea.vmem [#allocation2], 1
          // Predicated region
          $region37: #{tpu_custom_call.1} parent=31 // pred_check
            _
          $region38: #{tpu_custom_call.1} parent=31 // pred_check_branch
            %160 = sbr.rel target = $region40
          $region39: #{tpu_custom_call.1} parent=31 // pred_region
            %161 = sst [smem:[#allocation12]] [#allocation15]
            %162 = sst [smem:[#allocation13]] [#allocation14]
          $region40: #{tpu_custom_call.1} parent=31 // pred_fallthru
            _
          %164 = shalt.err (0)
          %s166 = sshll.u32 %s158, 4
          %s167 = int_to_ptr.vmem [resolvable:$true] %s166
          %169 = dma.hbm_to_vmem [thread:$0]  %s157, 16, %s167, [#allocation3]
          %s170 = sadd.s32 %s139, 2
          %s171 = sld [smem:[#allocation5 + %s170]]
          %s172 = smul.addr %s171, 16
          %s173 = scalar_lea.hbm %s1, %s172
          %s174 = scalar_lea.vmem [#allocation2], 2
          // Predicated region
          $region41: #{tpu_custom_call.1} parent=31 // pred_check
            _
          $region42: #{tpu_custom_call.1} parent=31 // pred_check_branch
            %176 = sbr.rel target = $region44
          $region43: #{tpu_custom_call.1} parent=31 // pred_region
            %177 = sst [smem:[#allocation12]] [#allocation17]
            %178 = sst [smem:[#allocation13]] [#allocation16]
          $region44: #{tpu_custom_call.1} parent=31 // pred_fallthru
            _
          %180 = shalt.err (0)
          %s182 = sshll.u32 %s174, 4
          %s183 = int_to_ptr.vmem [resolvable:$true] %s182
          %185 = dma.hbm_to_vmem [thread:$0]  %s173, 16, %s183, [#allocation3]
          %s186 = sadd.s32 %s139, 3
          %s187 = sld [smem:[#allocation5 + %s186]]
          %s188 = smul.addr %s187, 16
          %s189 = scalar_lea.hbm %s1, %s188
          %s190 = scalar_lea.vmem [#allocation2], 3
          // Predicated region
          $region45: #{tpu_custom_call.1} parent=31 // pred_check
            _
          $region46: #{tpu_custom_call.1} parent=31 // pred_check_branch
            %192 = sbr.rel target = $region48
          $region47: #{tpu_custom_call.1} parent=31 // pred_region
            %193 = sst [smem:[#allocation12]] [#allocation19]
            %194 = sst [smem:[#allocation13]] [#allocation18]
          $region48: #{tpu_custom_call.1} parent=31 // pred_fallthru
            _
          %196 = shalt.err (0)
          %s198 = sshll.u32 %s190, 4
          %s199 = int_to_ptr.vmem [resolvable:$true] %s198
          %201 = dma.hbm_to_vmem [thread:$0]  %s189, 16, %s199, [#allocation3]
          %s202 = sadd.s32 %s139, 4
          %s203 = sld [smem:[#allocation5 + %s202]]
          %s204 = smul.addr %s203, 16
          %s205 = scalar_lea.hbm %s1, %s204
          %s206 = scalar_lea.vmem [#allocation2], 4
          // Predicated region
          $region49: #{tpu_custom_call.1} parent=31 // pred_check
            _
          $region50: #{tpu_custom_call.1} parent=31 // pred_check_branch
            %208 = sbr.rel target = $region52
          $region51: #{tpu_custom_call.1} parent=31 // pred_region
            %209 = sst [smem:[#allocation12]] [#allocation21]
            %210 = sst [smem:[#allocation13]] [#allocation20]
          $region52: #{tpu_custom_call.1} parent=31 // pred_fallthru
            _
          %212 = shalt.err (0)
          %s214 = sshll.u32 %s206, 4
          %s215 = int_to_ptr.vmem [resolvable:$true] %s214
          %217 = dma.hbm_to_vmem [thread:$0]  %s205, 16, %s215, [#allocation3]
          %s218 = sadd.s32 %s139, 5
          %s219 = sld [smem:[#allocation5 + %s218]]
          %s220 = smul.addr %s219, 16
          %s221 = scalar_lea.hbm %s1, %s220
          %s222 = scalar_lea.vmem [#allocation2], 5
          // Predicated region
          $region53: #{tpu_custom_call.1} parent=31 // pred_check
            _
          $region54: #{tpu_custom_call.1} parent=31 // pred_check_branch
            %224 = sbr.rel target = $region56
          $region55: #{tpu_custom_call.1} parent=31 // pred_region
            %225 = sst [smem:[#allocation12]] [#allocation23]
            %226 = sst [smem:[#allocation13]] [#allocation22]
          $region56: #{tpu_custom_call.1} parent=31 // pred_fallthru
            _
          %228 = shalt.err (0)
          %s230 = sshll.u32 %s222, 4
          %s231 = int_to_ptr.vmem [resolvable:$true] %s230
          %233 = dma.hbm_to_vmem [thread:$0]  %s221, 16, %s231, [#allocation3]
          %s234 = sadd.s32 %s139, 6
          %s235 = sld [smem:[#allocation5 + %s234]]
          %s236 = smul.addr %s235, 16
          %s237 = scalar_lea.hbm %s1, %s236
          %s238 = scalar_lea.vmem [#allocation2], 6
          // Predicated region
          $region57: #{tpu_custom_call.1} parent=31 // pred_check
            _
          $region58: #{tpu_custom_call.1} parent=31 // pred_check_branch
            %240 = sbr.rel target = $region60
          $region59: #{tpu_custom_call.1} parent=31 // pred_region
            %241 = sst [smem:[#allocation12]] [#allocation25]
            %242 = sst [smem:[#allocation13]] [#allocation24]
          $region60: #{tpu_custom_call.1} parent=31 // pred_fallthru
            _
          %244 = shalt.err (0)
          %s246 = sshll.u32 %s238, 4
          %s247 = int_to_ptr.vmem [resolvable:$true] %s246
          %249 = dma.hbm_to_vmem [thread:$0]  %s237, 16, %s247, [#allocation3]
          %s250 = sadd.s32 %s139, 7
          %s251 = sld [smem:[#allocation5 + %s250]]
          %s252 = smul.addr %s251, 16
          %s253 = scalar_lea.hbm %s1, %s252
          %s254 = scalar_lea.vmem [#allocation2], 7
          // Predicated region
          $region61: #{tpu_custom_call.1} parent=31 // pred_check
            _
          $region62: #{tpu_custom_call.1} parent=31 // pred_check_branch
            %256 = sbr.rel target = $region64
          $region63: #{tpu_custom_call.1} parent=31 // pred_region
            %257 = sst [smem:[#allocation12]] [#allocation27]
            %258 = sst [smem:[#allocation13]] [#allocation26]
          $region64: #{tpu_custom_call.1} parent=31 // pred_fallthru
            _
          %260 = shalt.err (0)
          %s262 = sshll.u32 %s254, 4
          %s263 = int_to_ptr.vmem [resolvable:$true] %s262
          %265 = dma.hbm_to_vmem [thread:$0]  %s253, 16, %s263, [#allocation3]
        $region32: #{tpu_custom_call.1} parent=23 // pred_fallthru
          _
        %s266 = sadd.s32 %s27, 1
        %p267 = scmp.lt.s32.totalorder %s266, 2
        // Predicated region
        $region65: #{tpu_custom_call.1} parent=23 // pred_check
          %p268 = pneg %p267
        $region66: #{tpu_custom_call.1} parent=23 // pred_check_branch
          %270 = sbr.rel (%p268) target = $region68
        $region67: #{tpu_custom_call.1} parent=23 // pred_region
          %s271 = sand.u32 %s266, 1
          %s272 = smul.u32 %s266, 8
          %s273 = smul.u32 %s26, 8
          %s274 = sadd.s32 %s272, %s273
          %s275 = sld [smem:[#allocation5 + %s274]]
          %s276 = smul.addr %s275, 16
          %s277 = scalar_lea.hbm %s1, %s276
          %s278 = smul.u32 %s271, 8
          %s279 = scalar_lea.vmem [#allocation2], %s278
          %s280 = scalar_lea.sflag [#allocation3], %s271
          // Predicated region
          $region69: #{tpu_custom_call.1} parent=67 // pred_check
            _
          $region70: #{tpu_custom_call.1} parent=67 // pred_check_branch
            %282 = sbr.rel target = $region72
          $region71: #{tpu_custom_call.1} parent=67 // pred_region
            %283 = sst [smem:[#allocation12]] [#allocation29]
            %284 = sst [smem:[#allocation13]] [#allocation28]
          $region72: #{tpu_custom_call.1} parent=67 // pred_fallthru
            _
          %286 = shalt.err (0)
          %s288 = sshll.u32 %s279, 4
          %s289 = int_to_ptr.vmem [resolvable:$true] %s288
          %291 = dma.hbm_to_vmem [thread:$0]  %s277, 16, %s289, %s280
          %s292 = sadd.s32 %s274, 1
          %s293 = sld [smem:[#allocation5 + %s292]]
          %s294 = smul.addr %s293, 16
          %s295 = scalar_lea.hbm %s1, %s294
          %s296 = sadd.s32 1, %s278
          %s297 = scalar_lea.vmem [#allocation2], %s296
          // Predicated region
          $region73: #{tpu_custom_call.1} parent=67 // pred_check
            _
          $region74: #{tpu_custom_call.1} parent=67 // pred_check_branch
            %299 = sbr.rel target = $region76
          $region75: #{tpu_custom_call.1} parent=67 // pred_region
            %300 = sst [smem:[#allocation12]] [#allocation31]
            %301 = sst [smem:[#allocation13]] [#allocation30]
          $region76: #{tpu_custom_call.1} parent=67 // pred_fallthru
            _
          %303 = shalt.err (0)
          %s305 = sshll.u32 %s297, 4
          %s306 = int_to_ptr.vmem [resolvable:$true] %s305
          %308 = dma.hbm_to_vmem [thread:$0]  %s295, 16, %s306, %s280
          %s309 = sadd.s32 %s274, 2
          %s310 = sld [smem:[#allocation5 + %s309]]
          %s311 = smul.addr %s310, 16
          %s312 = scalar_lea.hbm %s1, %s311
          %s313 = sadd.s32 2, %s278
          %s314 = scalar_lea.vmem [#allocation2], %s313
          // Predicated region
          $region77: #{tpu_custom_call.1} parent=67 // pred_check
            _
          $region78: #{tpu_custom_call.1} parent=67 // pred_check_branch
            %316 = sbr.rel target = $region80
          $region79: #{tpu_custom_call.1} parent=67 // pred_region
            %317 = sst [smem:[#allocation12]] [#allocation33]
            %318 = sst [smem:[#allocation13]] [#allocation32]
          $region80: #{tpu_custom_call.1} parent=67 // pred_fallthru
            _
          %320 = shalt.err (0)
          %s322 = sshll.u32 %s314, 4
          %s323 = int_to_ptr.vmem [resolvable:$true] %s322
          %325 = dma.hbm_to_vmem [thread:$0]  %s312, 16, %s323, %s280
          %s326 = sadd.s32 %s274, 3
          %s327 = sld [smem:[#allocation5 + %s326]]
          %s328 = smul.addr %s327, 16
          %s329 = scalar_lea.hbm %s1, %s328
          %s330 = sadd.s32 3, %s278
          %s331 = scalar_lea.vmem [#allocation2], %s330
          // Predicated region
          $region81: #{tpu_custom_call.1} parent=67 // pred_check
            _
          $region82: #{tpu_custom_call.1} parent=67 // pred_check_branch
            %333 = sbr.rel target = $region84
          $region83: #{tpu_custom_call.1} parent=67 // pred_region
            %334 = sst [smem:[#allocation12]] [#allocation35]
            %335 = sst [smem:[#allocation13]] [#allocation34]
          $region84: #{tpu_custom_call.1} parent=67 // pred_fallthru
            _
          %337 = shalt.err (0)
          %s339 = sshll.u32 %s331, 4
          %s340 = int_to_ptr.vmem [resolvable:$true] %s339
          %342 = dma.hbm_to_vmem [thread:$0]  %s329, 16, %s340, %s280
          %s343 = sadd.s32 %s274, 4
          %s344 = sld [smem:[#allocation5 + %s343]]
          %s345 = smul.addr %s344, 16
          %s346 = scalar_lea.hbm %s1, %s345
          %s347 = sadd.s32 4, %s278
          %s348 = scalar_lea.vmem [#allocation2], %s347
          // Predicated region
          $region85: #{tpu_custom_call.1} parent=67 // pred_check
            _
          $region86: #{tpu_custom_call.1} parent=67 // pred_check_branch
            %350 = sbr.rel target = $region88
          $region87: #{tpu_custom_call.1} parent=67 // pred_region
            %351 = sst [smem:[#allocation12]] [#allocation37]
            %352 = sst [smem:[#allocation13]] [#allocation36]
          $region88: #{tpu_custom_call.1} parent=67 // pred_fallthru
            _
          %354 = shalt.err (0)
          %s356 = sshll.u32 %s348, 4
          %s357 = int_to_ptr.vmem [resolvable:$true] %s356
          %359 = dma.hbm_to_vmem [thread:$0]  %s346, 16, %s357, %s280
          %s360 = sadd.s32 %s274, 5
          %s361 = sld [smem:[#allocation5 + %s360]]
          %s362 = smul.addr %s361, 16
          %s363 = scalar_lea.hbm %s1, %s362
          %s364 = sadd.s32 5, %s278
          %s365 = scalar_lea.vmem [#allocation2], %s364
          // Predicated region
          $region89: #{tpu_custom_call.1} parent=67 // pred_check
            _
          $region90: #{tpu_custom_call.1} parent=67 // pred_check_branch
            %367 = sbr.rel target = $region92
          $region91: #{tpu_custom_call.1} parent=67 // pred_region
            %368 = sst [smem:[#allocation12]] [#allocation39]
            %369 = sst [smem:[#allocation13]] [#allocation38]
          $region92: #{tpu_custom_call.1} parent=67 // pred_fallthru
            _
          %371 = shalt.err (0)
          %s373 = sshll.u32 %s365, 4
          %s374 = int_to_ptr.vmem [resolvable:$true] %s373
          %376 = dma.hbm_to_vmem [thread:$0]  %s363, 16, %s374, %s280
          %s377 = sadd.s32 %s274, 6
          %s378 = sld [smem:[#allocation5 + %s377]]
          %s379 = smul.addr %s378, 16
          %s380 = scalar_lea.hbm %s1, %s379
          %s381 = sadd.s32 6, %s278
          %s382 = scalar_lea.vmem [#allocation2], %s381
          // Predicated region
          $region93: #{tpu_custom_call.1} parent=67 // pred_check
            _
          $region94: #{tpu_custom_call.1} parent=67 // pred_check_branch
            %384 = sbr.rel target = $region96
          $region95: #{tpu_custom_call.1} parent=67 // pred_region
            %385 = sst [smem:[#allocation12]] [#allocation41]
            %386 = sst [smem:[#allocation13]] [#allocation40]
          $region96: #{tpu_custom_call.1} parent=67 // pred_fallthru
            _
          %388 = shalt.err (0)
          %s390 = sshll.u32 %s382, 4
          %s391 = int_to_ptr.vmem [resolvable:$true] %s390
          %393 = dma.hbm_to_vmem [thread:$0]  %s380, 16, %s391, %s280
          %s394 = sadd.s32 %s274, 7
          %s395 = sld [smem:[#allocation5 + %s394]]
          %s396 = smul.addr %s395, 16
          %s397 = scalar_lea.hbm %s1, %s396
          %s398 = sadd.s32 7, %s278
          %s399 = scalar_lea.vmem [#allocation2], %s398
          // Predicated region
          $region97: #{tpu_custom_call.1} parent=67 // pred_check
            _
          $region98: #{tpu_custom_call.1} parent=67 // pred_check_branch
            %401 = sbr.rel target = $region100
          $region99: #{tpu_custom_call.1} parent=67 // pred_region
            %402 = sst [smem:[#allocation12]] [#allocation43]
            %403 = sst [smem:[#allocation13]] [#allocation42]
          $region100: #{tpu_custom_call.1} parent=67 // pred_fallthru
            _
          %405 = shalt.err (0)
          %s407 = sshll.u32 %s399, 4
          %s408 = int_to_ptr.vmem [resolvable:$true] %s407
          %410 = dma.hbm_to_vmem [thread:$0]  %s397, 16, %s408, %s280
        $region68: #{tpu_custom_call.1} parent=23 // pred_fallthru
          _
        %s411 = sand.u32 %s27, 1
        %s412 = smul.u32 %s411, 8
        %s413 = scalar_lea.vmem [#allocation2], %s412
        %s414 = scalar_lea.sflag [#allocation3], %s411
        %s415 = smul.u32 8, 1
        %s416 = sshll.u32 %s415, 4
        %417 = dma.done %s414, %s416
        %v418 = vld [vmem:[%s413] sm:$0xff]
        %v419 = vld [vmem:[#allocation6] sm:$0xff]
        %v420 = vadd.f32 %v418, %v419
        %421 = vst [vmem:[%s134] sm:$0xff] %v420
        %s422 = sand.u32 %s70, 1
        %s423 = scalar_lea.sflag [#allocation8], %s422
        %s424 = sand.u32 %s70, 1
        %s425 = smul.addr %s424, 8
        %s426 = scalar_lea.vmem [#allocation9], %s425
        // Predicated region
        $region101: #{tpu_custom_call.1} parent=23 // pred_check
          %p427 = pneg %p80
        $region102: #{tpu_custom_call.1} parent=23 // pred_check_branch
          %429 = sbr.rel (%p427) target = $region104
        $region103: #{tpu_custom_call.1} parent=23 // pred_region
          %s431 = ssub.s32 128, 128
          %432 = vsyncadd %s423, %s431
          %s433 = sadd.s32 %s26, %s27
          %s434 = smul.addr %s433, 128
          %s435 = scalar_lea.hbm %s3, %s434
          %s437 = sshll.u32 %s426, 4
          %s438 = int_to_ptr.vmem [resolvable:$true] %s437
          %440 = dma.vmem_to_hbm [thread:$0]  %s438, 128, %s435, %s423
        $region104: #{tpu_custom_call.1} parent=23 // pred_fallthru
          _
      $region24: #{tpu_custom_call.1} parent=5 // pred_fallthru
        _
      %p441 = scmp.le.s32.totalorder 2, %s17
      // Predicated region
      $region105: #{tpu_custom_call.1} parent=5 // pred_check
        %p442 = pneg %p441
      $region106: #{tpu_custom_call.1} parent=5 // pred_check_branch
        %444 = sbr.rel (%p442) target = $region108
      $region107: #{tpu_custom_call.1} parent=5 // pred_region
        %s445 = ssub.s32 %s17, 2
        // Predicated region
        $region109: #{tpu_custom_call.1} parent=107 // pred_check
          %p446 = pneg %p86
        $region110: #{tpu_custom_call.1} parent=107 // pred_check_branch
          %448 = sbr.rel (%p446) target = $region112
        $region111: #{tpu_custom_call.1} parent=107 // pred_region
          %s449 = sand.u32 %s71, 1
          %s450 = scalar_lea.sflag [#allocation8], %s449
          %s451 = sand.u32 %s71, 1
          %s452 = smul.addr %s451, 8
          %s453 = scalar_lea.vmem [#allocation9], %s452
          %454 = dma.done %s450, 128
        $region112: #{tpu_custom_call.1} parent=107 // pred_fallthru
          _
      $region108: #{tpu_custom_call.1} parent=5 // pred_fallthru
        _
    $region6: #{tpu_custom_call.1} parent=1 // loop_footer
      %s21 = sadd.s32 1, %s17
    $region7: #{tpu_custom_call.1} parent=1 // loop_footer_branch
      %16 = sbr.rel target = $region3
    $region8: #{tpu_custom_call.1} parent=1 // loop_exit
      _
    %455 = vsyncpa [#allocation7], 1
    %s456 = scalar_lea.sflag [#allocation7], 1
    %457 = vsyncpa %s456, 1
    %458 = vsyncpa [#allocation8], 1
    %s459 = scalar_lea.sflag [#allocation8], 1
    %460 = vsyncpa %s459, 1
  %461 = vsyncmov [#allocation3]
  %s462 = vpop.sfrf %461
  %p463 = scmp.eq.s32.totalorder %s462, 0
  %p464 = pneg %p463
  %466 = shalt.err (%p464)
  %s467 = scalar_lea.sflag [#allocation3], 1
  %468 = vsyncmov %s467
  %s469 = vpop.sfrf %468
  %p470 = scmp.eq.s32.totalorder %s469, 0
  %p471 = pneg %p470
  %473 = shalt.err (%p471)

</llo_original>
